<compile_context>
chip_gen: v6e
topology: v6e:2x2x1
jax: 0.10.0
libtpu: 0.0.40
codegen_flags: <defaults>
</compile_context>

<pallas_src>
import functools

import jax
import jax.numpy as jnp
import numpy as np
from jax.experimental import pallas as pl
from jax.experimental.pallas import tpu as pltpu

SD = 17            # state dim (len(mean) == len(std_dev))
AD = 6             # action dim (AD + SD == num_ae_features == 23)
T = 5              # ae_timesteps
F = 23             # ae_features
TF = T * F         # 115 — flattened AE history length
H = 32             # synthetic policy hidden width
E = 32             # synthetic AE embedding width
QH = 32            # synthetic qf hidden width
LANES = 128        # TPU lane width; all kernel rows are 128 lanes wide
SHIFT = (T - 1) * F            # 92 — lane offset of the newest observation
MSE_LANE = LANES - 1           # 127 — spare lane of the action row carrying MSE
assert AD < MSE_LANE and SHIFT + F <= LANES and TF < LANES

# Weight-slab row offsets.  Every matmul panel is a full (128,128) block (zero
# padded) so MXU operands use unmasked full-lane loads; bias rows start on
# 8-row boundaries.  One coalesced slab => one weight DMA per pallas_call.
R_WP1, R_WP2, R_WE, R_WD = 0, 128, 256, 384
R_BP1, R_BP2, R_BE, R_BD = 512, 520, 528, 536
SLAB_ROWS = 544                                   # 544*128*4 B ≈ 272 KiB

_MEAN = [-0.11004163, 0.15697056, 0.10378583, 0.14686427, 0.07841891,
         -0.20104693, -0.08223713, -0.2802379, 4.463383, -0.07576275,
         -0.09257912, 0.4192936, -0.41244322, 0.11662842, -0.05935472,
         -0.09750155, -0.14589772]
_STD = [0.10859901, 0.6113909, 0.4913569, 0.44862902, 0.3971792,
        0.48135453, 0.30596346, 0.26374257, 1.9015079, 0.93880796,
        1.6241817, 14.426355, 11.995561, 11.984273, 12.15909,
        8.126285, 6.4183607]


# ------------------------------ fused Pallas kernel ---------------------------
def _make_step_block_kernel(bm):
  """Kernel processing one block of `bm` consecutive environment steps."""

  def kernel(states_ref, init_prev_ref, slab_ref, out_ref, prev_obs_ref):
    # states_ref:    (bm, 128)  raw states in lanes [0,17); padded rows are zero
    # init_prev_ref: (bm, 128)  rows [bm-4,bm) = the 4 newest initial-cell rows
    #                           as observation rows (lanes [0,23)); pinned.
    # slab_ref:      (544,128)  packed weights/biases; pinned, VMEM resident.
    # out_ref:       (bm, 256)  lanes [0,128): action (+MSE in lane 127),
    #                           lanes [128,243): new flat AE history.
    # prev_obs_ref:  (bm, 128)  VMEM carry: previous block's observation rows.
    blk = pl.program_id(0)
    lane = jax.lax.broadcasted_iota(jnp.int32, (bm, LANES), 1)
    row = jax.lax.broadcasted_iota(jnp.int32, (bm, LANES), 0)

    @pl.when(blk == 0)
    def _():
      prev_obs_ref[...] = init_prev_ref[...]

    s = states_ref[...]

    # --- policy.act (deterministic tanh-MLP mean head), batched M = bm -------
    h = jnp.tanh(
        jnp.dot(s, slab_ref[R_WP1:R_WP1 + LANES, :],
                preferred_element_type=jnp.float32)
        + slab_ref[R_BP1:R_BP1 + 1, :])
    act = jnp.tanh(
        jnp.dot(h, slab_ref[R_WP2:R_WP2 + LANES, :],
                preferred_element_type=jnp.float32)
        + slab_ref[R_BP2:R_BP2 + 1, :])
    # Enforce (not just rely on) the invariant that action lanes >= AD are 0 —
    # the roll-based history construction below depends on it.
    act = jnp.where(lane < AD, act, 0.0)

    # observation rows: [action | state] packed in lanes [0, 23)
    obs = jnp.where(lane < F, act + pltpu.roll(s, AD, axis=1), 0.0)

    # --- cell-state histories for all bm steps (pure shift register) ---------
    # hist[i], slot k (lanes [k*23,(k+1)*23)) = obs[i-(4-k)]; negative indices
    # come from the carried previous-block observations (rows bm-4..bm-1).
    prev = prev_obs_ref[...]
    hist = pltpu.roll(obs, SHIFT, axis=1)          # slot 4: the new observation
    for d in range(1, T):                          # d = 1..4 steps back
      cur = pltpu.roll(obs, d, axis=0)             # rows i >= d: obs[i-d]
      prv = pltpu.roll(prev, d, axis=0)            # rows i <  d: prev[bm+i-d]
      picked = jnp.where(row >= d, cur, prv)
      off = (T - 1 - d) * F
      hist = hist + (pltpu.roll(picked, off, axis=1) if off else picked)

    prev_obs_ref[...] = obs                        # carry to the next grid step

    # --- autoencoder forward + per-step MSE over the 115 valid lanes ---------
    e = jnp.tanh(
        jnp.dot(hist, slab_ref[R_WE:R_WE + LANES, :],
                preferred_element_type=jnp.float32)
        + slab_ref[R_BE:R_BE + 1, :])
    recon = (jnp.dot(e, slab_ref[R_WD:R_WD + LANES, :],
                     preferred_element_type=jnp.float32)
             + slab_ref[R_BD:R_BD + 1, :])
    diff = jnp.where(lane < TF, recon - hist, 0.0)
    mse = jnp.sum(diff * diff, axis=1, keepdims=True) * (1.0 / TF)   # (bm, 1)

    # Merge both per-step results into one lane-dense (bm, 256) store; the
    # scalar MSE rides in spare lane 127 of the action half (AD << 127).
    act_out = jnp.where(lane == MSE_LANE, mse, act)
    out_ref[...] = jnp.concatenate([act_out, hist], axis=-1)

  return kernel


@functools.lru_cache(maxsize=None)
def _build_call(total_rows, bm):
  assert total_rows % bm == 0 and bm % 8 == 0
  nblk = total_rows // bm
  return pl.pallas_call(
      _make_step_block_kernel(bm),
      out_shape=jax.ShapeDtypeStruct((total_rows, 2 * LANES), jnp.float32),
      grid_spec=pltpu.PrefetchScalarGridSpec(
          num_scalar_prefetch=0,
          grid=(nblk,),
          in_specs=[
              pl.BlockSpec((bm, LANES), lambda b: (b, 0)),          # states
              pl.BlockSpec((bm, LANES), lambda b: (0, 0)),          # init prev, pinned
              pl.BlockSpec((SLAB_ROWS, LANES), lambda b: (0, 0)),   # weight slab, pinned
          ],
          out_specs=pl.BlockSpec((bm, 2 * LANES), lambda b: (b, 0)),
          scratch_shapes=[pltpu.VMEM((bm, LANES), jnp.float32)]),   # obs carry
      # The step-block axis carries recurrent state so it must stay
      # "arbitrary"; an independent env-batch axis (if ever added) would be the
      # "parallel" axis to shard across v7x's 2 TensorCores.
      compiler_params=pltpu.CompilerParams(
          dimension_semantics=("arbitrary",)),
  )


# -------- pure-JAX mirrors (gradient bookkeeping only, not the hot path) -----
def _ae_recon(flat, p):
  return jnp.tanh(flat @ p['We'] + p['be']) @ p['Wd'] + p['bd']


def _next_flat(action, state, prev_flat):
  return jnp.concatenate([prev_flat[F:], action, state], axis=-1)


# TODO(synk): torch.autograd.grad has no Pallas equivalent; these side-effect
# gradients use jax.grad on pure-JAX mirrors of the same math, vmapped over the
# step batch and fused into the same jitted dispatch as the kernel.
def _mse_from_action(action, state, prev_flat, p):
  flat = _next_flat(action, state, prev_flat)
  r = _ae_recon(flat, p)
  return jnp.mean((r - flat) ** 2)


def _qf_from_action(action, state, prev_flat, p):
  flat = _next_flat(action, state, prev_flat)
  r = _ae_recon(flat, p)
  mse = jnp.mean((r - flat) ** 2)
  x = jnp.concatenate([state, action, mse[None]], axis=-1)
  hq = jnp.tanh(x @ p['Wq1'] + p['bq1'])
  return jnp.sum(hq @ p['Wq2'] + p['bq2'])


def _round_up(x, m):
  return -(-x // m) * m


def _pick_bm(n):
  # MXU M rows per grid step: as many as possible up to 128 (saturates a v5e
  # MXU pass; v6e/v7x are 256 tall but 128 keeps small batches to one block).
  return min(128, _round_up(max(n, 1), 8))


@functools.partial(jax.jit, static_argnames=("bm",))
def _device_run(states, cell_flat, slab, params, *, bm):
  """One fused dispatch for N consecutive env steps (N = states.shape[0])."""
  n = states.shape[0]
  p_rows = _round_up(n, bm)
  # Lane padding happens once per multi-step dispatch (amortized), not per step.
  states_rows = jnp.zeros((p_rows, LANES), jnp.float32).at[:n, :SD].set(states)
  cell3 = cell_flat.reshape(T, F)
  init_prev = jnp.zeros((bm, LANES), jnp.float32).at[bm - (T - 1):, :F].set(cell3[1:])

  out = _build_call(p_rows, bm)(states_rows, init_prev, slab)
  actions = out[:n, :AD]                       # (n, 6)
  mses = out[:n, MSE_LANE]                     # (n,)
  hists = out[:n, LANES:LANES + TF]            # (n, 115): flat history AFTER step i

  prev_flat = jnp.concatenate([cell_flat[None, :], hists[:-1]], axis=0)   # (n, 115)
  mse_grads = jax.vmap(jax.grad(_mse_from_action), in_axes=(0, 0, 0, None))(
      actions, states, prev_flat, params)      # (n, 6)
  q_grads = jax.vmap(jax.grad(_qf_from_action), in_axes=(0, 0, 0, None))(
      actions, states, prev_flat, params)      # (n, 6)
  return actions, hists, mses, mse_grads, q_grads


# ----------------------------------- module -----------------------------------
class AEOpexCellStateModelMSE:
  """JAX/Pallas port of Streetwise/ae_mse_util.AEOpexCellStateModelMSE."""

  def __init__(self, param_key, num_ae_features=F):
    assert num_ae_features == F
    self.ae_timesteps = T
    self.ae_features = num_ae_features
    # Device values accumulated here; host transfer is deferred (batched) to
    # the accessor methods instead of syncing on every forward().
    self.mse_loss_history = []
    self.mse_grad_history = []
    self.grad_a_history = []
    # Kept for parity with the reference module; the normalization they feed
    # (`norm_state`) is dead code in the reference forward (never consumed).
    self.mean = list(_MEAN)
    self.std_dev = list(_STD)

    ks = jax.random.split(param_key, 6)

    def init(k, shape, fan_in):
      return jax.random.normal(k, shape, jnp.float32) / jnp.sqrt(float(fan_in))

    p = {
        'Wp1': init(ks[0], (SD, H), SD),   'bp1': jnp.zeros((H,), jnp.float32),
        'Wp2': init(ks[1], (H, AD), H),    'bp2': jnp.zeros((AD,), jnp.float32),
        'We':  init(ks[2], (TF, E), TF),   'be':  jnp.zeros((E,), jnp.float32),
        'Wd':  init(ks[3], (E, TF), E),    'bd':  jnp.zeros((TF,), jnp.float32),
        'Wq1': init(ks[4], (SD + AD + 1, QH), SD + AD + 1),
        'bq1': jnp.zeros((QH,), jnp.float32),
        'Wq2': init(ks[5], (QH, 1), QH),   'bq2': jnp.zeros((1,), jnp.float32),
    }
    self.params = p

    # Coalesce every kernel-side weight/bias into ONE (544,128) f32 slab with
    # full-lane (128-wide) panels.  Built once; the kernel's BlockSpec pins it
    # with a constant index_map so it is DMA'd once per pallas_call and stays
    # VMEM resident across all grid steps.
    # TODO(synk): a bf16 slab (with f32 MXU accumulation) would halve the
    # resident slab on v6e/v7x; kept f32 here so the reference check stays tight.
    slab = jnp.zeros((SLAB_ROWS, LANES), jnp.float32)
    slab = slab.at[R_WP1:R_WP1 + SD, 0:H].set(p['Wp1'])
    slab = slab.at[R_WP2:R_WP2 + H, 0:AD].set(p['Wp2'])
    slab = slab.at[R_WE:R_WE + TF, 0:E].set(p['We'])
    slab = slab.at[R_WD:R_WD + E, 0:TF].set(p['Wd'])
    slab = slab.at[R_BP1, 0:H].set(p['bp1'])
    slab = slab.at[R_BP2, 0:AD].set(p['bp2'])
    slab = slab.at[R_BE, 0:E].set(p['be'])
    slab = slab.at[R_BD, 0:TF].set(p['bd'])
    self._slab = slab

  # ---- history accessors (lazy, batched host transfer) ----------------------
  def get_mse_loss_history(self):
    if not self.mse_loss_history:
      return np.zeros((0,), np.float32)
    parts = [np.atleast_1d(np.asarray(x, np.float32))
             for x in jax.device_get(self.mse_loss_history)]
    return np.concatenate(parts)

  def get_mse_grad_history(self):
    if not self.mse_grad_history:
      return []
    parts = [np.asarray(x, np.float32).reshape(-1, AD)
             for x in jax.device_get(self.mse_grad_history)]
    return np.concatenate(parts, axis=0).tolist()

  def get_grad_a_history(self):
    if not self.grad_a_history:
      return []
    parts = [np.asarray(x, np.float32).reshape(-1, AD)
             for x in jax.device_get(self.grad_a_history)]
    return np.concatenate(parts, axis=0).tolist()

  # ---- single-step API (parity with the torch module) -----------------------
  def forward(self, state, hidden_state, cell_state, deterministic=True):
    del deterministic  # synthetic policy is deterministic (tanh mean head)
    state = jnp.asarray(state, jnp.float32)
    cell_flat = jnp.reshape(jnp.asarray(cell_state, jnp.float32), (TF,))
    actions, hists, mses, mse_grads, q_grads = _device_run(
        state[None, :], cell_flat, self._slab, self.params, bm=8)
    self.mse_loss_history.append(mses)
    self.mse_grad_history.append(mse_grads)
    self.grad_a_history.append(q_grads)
    return actions[0:1], hidden_state, hists[0].reshape(1, T, F)

  # ---- batched multi-step path (the performance path) -----------------------
  def forward_steps(self, states, hidden_state, cell_state, block_rows=None):
    """Run N consecutive env steps in ONE fused kernel dispatch.

    Returns (actions (N,6), hidden_state, next_cell_states (N,5,23)); per-step
    MSE losses / gradients are appended to the histories exactly as N calls to
    forward() would have done.
    """
    states = jnp.asarray(states, jnp.float32)
    n = states.shape[0]
    bm = int(block_rows) if block_rows is not None else _pick_bm(n)
    assert bm % 8 == 0 and bm >= 8
    cell_flat = jnp.reshape(jnp.asarray(cell_state, jnp.float32), (TF,))
    actions, hists, mses, mse_grads, q_grads = _device_run(
        states, cell_flat, self._slab, self.params, bm=bm)
    self.mse_loss_history.append(mses)
    self.mse_grad_history.append(mse_grads)
    self.grad_a_history.append(q_grads)
    return actions, hidden_state, hists.reshape(n, T, F)


if __name__ == "__main__":
  key = jax.random.PRNGKey(0)
  k_state, k_states, k_hidden, k_cell, k_param = jax.random.split(key, 5)
  state = jax.random.normal(k_state, (SD,), jnp.float32)              # (17,)
  hidden_state = jax.random.normal(k_hidden, (1, TF), jnp.float32)    # (1, 115)
  cell_state = jax.random.normal(k_cell, (1, T, F), jnp.float32)      # (1, 5, 23)

  model = AEOpexCellStateModelMSE(k_param)
  p = model.params

  def ref_step(st, cell3):
    """Pure-JAX reference of one fused step (policy -> shift/append -> AE/MSE)."""
    a = jnp.tanh(jnp.tanh(st @ p['Wp1'] + p['bp1']) @ p['Wp2'] + p['bp2'])
    flat = jnp.concatenate([cell3.reshape(T * F)[F:], a, st])
    recon = jnp.tanh(flat @ p['We'] + p['be']) @ p['Wd'] + p['bd']
    return a, flat, jnp.mean((recon - flat) ** 2)

  # --- single-step parity check ------------------------------------------------
  action, hidden_out, next_cell = model.forward(state, hidden_state, cell_state)
  jax.block_until_ready((action, hidden_out, next_cell))

  a_ref, flat_ref, mse_ref = ref_step(state, cell_state.reshape(T, F))
  assert action.shape == (1, AD)
  assert hidden_out.shape == hidden_state.shape
  assert next_cell.shape == (1, T, F)
  assert jnp.allclose(action[0], a_ref, atol=5e-5)
  assert jnp.allclose(next_cell.reshape(-1), flat_ref, atol=5e-5)
  assert abs(float(model.get_mse_loss_history()[-1]) - float(mse_ref)) < 5e-5

  # --- batched multi-step path: 48 steps, one dispatch, grid of 3 x 16-row blocks
  N_STEPS = 48
  states_seq = jax.random.normal(k_states, (N_STEPS, SD), jnp.float32)
  acts_b, hidden_b, cells_b = model.forward_steps(
      states_seq, hidden_state, next_cell, block_rows=16)
  jax.block_until_ready((acts_b, cells_b))
  mses_b = model.get_mse_loss_history()[-N_STEPS:]

  cell = np.asarray(next_cell.reshape(T, F))
  for i in range(N_STEPS):
    a_r, flat_r, m_r = ref_step(states_seq[i], jnp.asarray(cell))
    assert jnp.allclose(acts_b[i], a_r, atol=5e-5)
    assert jnp.allclose(cells_b[i].reshape(-1), flat_r, atol=5e-5)
    assert abs(float(mses_b[i]) - float(m_r)) < 5e-5
    cell = np.asarray(flat_r).reshape(T, F)

  mg = model.get_mse_grad_history()
  qg = model.get_grad_a_history()
  assert len(mg) == 1 + N_STEPS and len(mg[0]) == AD
  assert len(qg) == 1 + N_STEPS and len(qg[0]) == AD
  assert np.all(np.isfinite(np.asarray(mg)))
  assert np.all(np.isfinite(np.asarray(qg)))
  print("KERNEL_OK")
</pallas_src>

<mosaic_0001>
module attributes {stable_mosaic.version = 11 : i64} {
  func.func @kernel(%arg0: i32, %arg1: memref<8x128xf32, #tpu.memory_space<vmem>>, %arg2: memref<8x128xf32, #tpu.memory_space<vmem>>, %arg3: memref<544x128xf32, #tpu.memory_space<vmem>>, %arg4: memref<8x256xf32, #tpu.memory_space<vmem>>, %arg5: memref<8x128xf32, #tpu.memory_space<vmem>>) attributes {dimension_semantics = [#tpu.dimension_semantics<arbitrary>], iteration_bounds = array<i64: 1>, scalar_prefetch = 0 : i64, scratch_operands = 1 : i64, tpu.core_type = #tpu.core_type<tc>, window_params = [{transform_indices = @transform_0, window_bounds = array<i64: 8, 128>}, {pipeline_mode = #tpu.pipeline_mode<synchronous>, transform_indices = @transform_1, window_bounds = array<i64: 8, 128>}, {pipeline_mode = #tpu.pipeline_mode<synchronous>, transform_indices = @transform_2, window_bounds = array<i64: 544, 128>}, {transform_indices = @transform_3, window_bounds = array<i64: 8, 256>}]} {
    %0 = tpu.iota {dimensions = array<i32: 1>} : vector<8x128xi32>
    %1 = tpu.iota {dimensions = array<i32: 0>} : vector<8x128xi32>
    %c0_i32 = arith.constant 0 : i32
    %2 = arith.cmpi eq, %arg0, %c0_i32 : i32
    %3 = arith.extui %2 : i1 to i32
    %c0_i32_0 = arith.constant 0 : i32
    %4 = arith.cmpi ne, %3, %c0_i32_0 : i32
    scf.if %4 {
      %c0_35 = arith.constant 0 : index
      %c0_36 = arith.constant 0 : index
      %86 = vector.load %arg2[%c0_35, %c0_36] : memref<8x128xf32, #tpu.memory_space<vmem>>, vector<8x128xf32>
      %c0_37 = arith.constant 0 : index
      %c0_38 = arith.constant 0 : index
      %87 = vector.load %arg5[%c0_37, %c0_38] : memref<8x128xf32, #tpu.memory_space<vmem>>, vector<8x128xf32>
      tpu.vector_store %arg5[%c0_37, %c0_38], %86 {strides = array<i32>} : memref<8x128xf32, #tpu.memory_space<vmem>>, vector<8x128xf32>,
    } else {
    }
    %c0 = arith.constant 0 : index
    %c0_1 = arith.constant 0 : index
    %5 = vector.load %arg1[%c0, %c0_1] : memref<8x128xf32, #tpu.memory_space<vmem>>, vector<8x128xf32>
    %c0_2 = arith.constant 0 : index
    %c0_3 = arith.constant 0 : index
    %6 = vector.load %arg3[%c0_2, %c0_3] : memref<544x128xf32, #tpu.memory_space<vmem>>, vector<128x128xf32>
    %cst = arith.constant dense<0.000000e+00> : vector<8x128xf32>
    %7 = tpu.matmul %5, %6, %cst {dimension_numbers = #tpu.dot_dimension_numbers<[1], [0], [0], [1], [0, 0, 1, 1], [], []>} : vector<8x128xf32>, vector<128x128xf32>, vector<8x128xf32> -> vector<8x128xf32>
    %c512 = arith.constant 512 : index
    %c0_4 = arith.constant 0 : index
    %8 = vector.load %arg3[%c512, %c0_4] : memref<544x128xf32, #tpu.memory_space<vmem>>, vector<1x128xf32>
    %9 = vector.broadcast %8 : vector<1x128xf32> to vector<8x128xf32>
    %10 = arith.addf %7, %9 : vector<8x128xf32>
    %11 = math.tanh %10 : vector<8x128xf32>
    %c128 = arith.constant 128 : index
    %c0_5 = arith.constant 0 : index
    %12 = vector.load %arg3[%c128, %c0_5] : memref<544x128xf32, #tpu.memory_space<vmem>>, vector<128x128xf32>
    %cst_6 = arith.constant dense<0.000000e+00> : vector<8x128xf32>
    %13 = tpu.matmul %11, %12, %cst_6 {dimension_numbers = #tpu.dot_dimension_numbers<[1], [0], [0], [1], [0, 0, 1, 1], [], []>} : vector<8x128xf32>, vector<128x128xf32>, vector<8x128xf32> -> vector<8x128xf32>
    %c520 = arith.constant 520 : index
    %c0_7 = arith.constant 0 : index
    %14 = vector.load %arg3[%c520, %c0_7] : memref<544x128xf32, #tpu.memory_space<vmem>>, vector<1x128xf32>
    %15 = vector.broadcast %14 : vector<1x128xf32> to vector<8x128xf32>
    %16 = arith.addf %13, %15 : vector<8x128xf32>
    %17 = math.tanh %16 : vector<8x128xf32>
    %c6_i32 = arith.constant 6 : i32
    %18 = vector.broadcast %c6_i32 : i32 to vector<8x128xi32>
    %19 = arith.cmpi slt, %0, %18 : vector<8x128xi32>
    %cst_8 = arith.constant 0.000000e+00 : f32
    %20 = vector.broadcast %cst_8 : f32 to vector<8x128xf32>
    %21 = arith.select %19, %17, %20 : vector<8x128xi1>, vector<8x128xf32>
    %c23_i32 = arith.constant 23 : i32
    %22 = vector.broadcast %c23_i32 : i32 to vector<8x128xi32>
    %23 = arith.cmpi slt, %0, %22 : vector<8x128xi32>
    %c6_i32_9 = arith.constant 6 : i32
    %24 = tpu.dynamic_rotate %5 by %c6_i32_9 dim 1 : vector<8x128xf32>, i32 -> vector<8x128xf32>
    %25 = arith.addf %21, %24 : vector<8x128xf32>
    %cst_10 = arith.constant 0.000000e+00 : f32
    %26 = vector.broadcast %cst_10 : f32 to vector<8x128xf32>
    %27 = arith.select %23, %25, %26 : vector<8x128xi1>, vector<8x128xf32>
    %c0_11 = arith.constant 0 : index
    %c0_12 = arith.constant 0 : index
    %28 = vector.load %arg5[%c0_11, %c0_12] : memref<8x128xf32, #tpu.memory_space<vmem>>, vector<8x128xf32>
    %c92_i32 = arith.constant 92 : i32
    %29 = tpu.dynamic_rotate %27 by %c92_i32 dim 1 : vector<8x128xf32>, i32 -> vector<8x128xf32>
    %c1_i32 = arith.constant 1 : i32
    %30 = tpu.dynamic_rotate %27 by %c1_i32 dim 0 : vector<8x128xf32>, i32 -> vector<8x128xf32>
    %c1_i32_13 = arith.constant 1 : i32
    %31 = tpu.dynamic_rotate %28 by %c1_i32_13 dim 0 : vector<8x128xf32>, i32 -> vector<8x128xf32>
    %c1_i32_14 = arith.constant 1 : i32
    %32 = vector.broadcast %c1_i32_14 : i32 to vector<8x128xi32>
    %33 = arith.cmpi sge, %1, %32 : vector<8x128xi32>
    %34 = arith.select %33, %30, %31 : vector<8x128xi1>, vector<8x128xf32>
    %c69_i32 = arith.constant 69 : i32
    %35 = tpu.dynamic_rotate %34 by %c69_i32 dim 1 : vector<8x128xf32>, i32 -> vector<8x128xf32>
    %36 = arith.addf %29, %35 : vector<8x128xf32>
    %c2_i32 = arith.constant 2 : i32
    %37 = tpu.dynamic_rotate %27 by %c2_i32 dim 0 : vector<8x128xf32>, i32 -> vector<8x128xf32>
    %c2_i32_15 = arith.constant 2 : i32
    %38 = tpu.dynamic_rotate %28 by %c2_i32_15 dim 0 : vector<8x128xf32>, i32 -> vector<8x128xf32>
    %c2_i32_16 = arith.constant 2 : i32
    %39 = vector.broadcast %c2_i32_16 : i32 to vector<8x128xi32>
    %40 = arith.cmpi sge, %1, %39 : vector<8x128xi32>
    %41 = arith.select %40, %37, %38 : vector<8x128xi1>, vector<8x128xf32>
    %c46_i32 = arith.constant 46 : i32
    %42 = tpu.dynamic_rotate %41 by %c46_i32 dim 1 : vector<8x128xf32>, i32 -> vector<8x128xf32>
    %43 = arith.addf %36, %42 : vector<8x128xf32>
    %c3_i32 = arith.constant 3 : i32
    %44 = tpu.dynamic_rotate %27 by %c3_i32 dim 0 : vector<8x128xf32>, i32 -> vector<8x128xf32>
    %c3_i32_17 = arith.constant 3 : i32
    %45 = tpu.dynamic_rotate %28 by %c3_i32_17 dim 0 : vector<8x128xf32>, i32 -> vector<8x128xf32>
    %c3_i32_18 = arith.constant 3 : i32
    %46 = vector.broadcast %c3_i32_18 : i32 to vector<8x128xi32>
    %47 = arith.cmpi sge, %1, %46 : vector<8x128xi32>
    %48 = arith.select %47, %44, %45 : vector<8x128xi1>, vector<8x128xf32>
    %c23_i32_19 = arith.constant 23 : i32
    %49 = tpu.dynamic_rotate %48 by %c23_i32_19 dim 1 : vector<8x128xf32>, i32 -> vector<8x128xf32>
    %50 = arith.addf %43, %49 : vector<8x128xf32>
    %c4_i32 = arith.constant 4 : i32
    %51 = tpu.dynamic_rotate %27 by %c4_i32 dim 0 : vector<8x128xf32>, i32 -> vector<8x128xf32>
    %c4_i32_20 = arith.constant 4 : i32
    %52 = tpu.dynamic_rotate %28 by %c4_i32_20 dim 0 : vector<8x128xf32>, i32 -> vector<8x128xf32>
    %c4_i32_21 = arith.constant 4 : i32
    %53 = vector.broadcast %c4_i32_21 : i32 to vector<8x128xi32>
    %54 = arith.cmpi sge, %1, %53 : vector<8x128xi32>
    %55 = arith.select %54, %51, %52 : vector<8x128xi1>, vector<8x128xf32>
    %56 = arith.addf %50, %55 : vector<8x128xf32>
    %c0_22 = arith.constant 0 : index
    %c0_23 = arith.constant 0 : index
    %57 = vector.load %arg5[%c0_22, %c0_23] : memref<8x128xf32, #tpu.memory_space<vmem>>, vector<8x128xf32>
    tpu.vector_store %arg5[%c0_22, %c0_23], %27 {strides = array<i32>} : memref<8x128xf32, #tpu.memory_space<vmem>>, vector<8x128xf32>,
    %c256 = arith.constant 256 : index
    %c0_24 = arith.constant 0 : index
    %58 = vector.load %arg3[%c256, %c0_24] : memref<544x128xf32, #tpu.memory_space<vmem>>, vector<128x128xf32>
    %cst_25 = arith.constant dense<0.000000e+00> : vector<8x128xf32>
    %59 = tpu.matmul %56, %58, %cst_25 {dimension_numbers = #tpu.dot_dimension_numbers<[1], [0], [0], [1], [0, 0, 1, 1], [], []>} : vector<8x128xf32>, vector<128x128xf32>, vector<8x128xf32> -> vector<8x128xf32>
    %c528 = arith.constant 528 : index
    %c0_26 = arith.constant 0 : index
    %60 = vector.load %arg3[%c528, %c0_26] : memref<544x128xf32, #tpu.memory_space<vmem>>, vector<1x128xf32>
    %61 = vector.broadcast %60 : vector<1x128xf32> to vector<8x128xf32>
    %62 = arith.addf %59, %61 : vector<8x128xf32>
    %63 = math.tanh %62 : vector<8x128xf32>
    %c384 = arith.constant 384 : index
    %c0_27 = arith.constant 0 : index
    %64 = vector.load %arg3[%c384, %c0_27] : memref<544x128xf32, #tpu.memory_space<vmem>>, vector<128x128xf32>
    %cst_28 = arith.constant dense<0.000000e+00> : vector<8x128xf32>
    %65 = tpu.matmul %63, %64, %cst_28 {dimension_numbers = #tpu.dot_dimension_numbers<[1], [0], [0], [1], [0, 0, 1, 1], [], []>} : vector<8x128xf32>, vector<128x128xf32>, vector<8x128xf32> -> vector<8x128xf32>
    %c536 = arith.constant 536 : index
    %c0_29 = arith.constant 0 : index
    %66 = vector.load %arg3[%c536, %c0_29] : memref<544x128xf32, #tpu.memory_space<vmem>>, vector<1x128xf32>
    %67 = vector.broadcast %66 : vector<1x128xf32> to vector<8x128xf32>
    %68 = arith.addf %65, %67 : vector<8x128xf32>
    %c115_i32 = arith.constant 115 : i32
    %69 = vector.broadcast %c115_i32 : i32 to vector<8x128xi32>
    %70 = arith.cmpi slt, %0, %69 : vector<8x128xi32>
    %71 = arith.subf %68, %56 : vector<8x128xf32>
    %cst_30 = arith.constant 0.000000e+00 : f32
    %72 = vector.broadcast %cst_30 : f32 to vector<8x128xf32>
    %73 = arith.select %70, %71, %72 : vector<8x128xi1>, vector<8x128xf32>
    %74 = arith.mulf %73, %73 : vector<8x128xf32>
    %cst_31 = arith.constant dense<0.000000e+00> : vector<8xf32>
    %75 = vector.multi_reduction <add>, %74, %cst_31 [1] : vector<8x128xf32> to vector<8xf32>
    %76 = vector.shape_cast %75 : vector<8xf32> to vector<8x1xf32>
    %cst_32 = arith.constant 0.00869565178 : f32
    %77 = vector.broadcast %cst_32 : f32 to vector<8x1xf32>
    %78 = arith.mulf %76, %77 : vector<8x1xf32>
    %c127_i32 = arith.constant 127 : i32
    %79 = vector.broadcast %c127_i32 : i32 to vector<8x128xi32>
    %80 = arith.cmpi eq, %0, %79 : vector<8x128xi32>
    %81 = vector.shape_cast %78 : vector<8x1xf32> to vector<8x1xf32>
    %82 = vector.broadcast %81 : vector<8x1xf32> to vector<8x128xf32>
    %83 = arith.select %80, %82, %21 : vector<8x128xi1>, vector<8x128xf32>
    %84 = tpu.concatenate %83, %56 in 1 : vector<8x128xf32>, vector<8x128xf32> -> vector<8x256xf32>
    %c0_33 = arith.constant 0 : index
    %c0_34 = arith.constant 0 : index
    %85 = vector.load %arg4[%c0_33, %c0_34] : memref<8x256xf32, #tpu.memory_space<vmem>>, vector<8x256xf32>
    tpu.vector_store %arg4[%c0_33, %c0_34], %84 {strides = array<i32>} : memref<8x256xf32, #tpu.memory_space<vmem>>, vector<8x256xf32>,
    return
  }
  func.func @transform_0(%arg0: i32) -> (i32, i32) {
    %c0_i32 = arith.constant 0 : i32
    %c0_i32_0 = arith.constant 0 : i32
    return %arg0, %c0_i32 : i32, i32
  }
  func.func @transform_1(%arg0: i32) -> (i32, i32) {
    %c0_i32 = arith.constant 0 : i32
    %c0_i32_0 = arith.constant 0 : i32
    %c0_i32_1 = arith.constant 0 : i32
    return %c0_i32, %c0_i32_0 : i32, i32
  }
  func.func @transform_2(%arg0: i32) -> (i32, i32) {
    %c0_i32 = arith.constant 0 : i32
    %c0_i32_0 = arith.constant 0 : i32
    %c0_i32_1 = arith.constant 0 : i32
    return %c0_i32, %c0_i32_0 : i32, i32
  }
  func.func @transform_3(%arg0: i32) -> (i32, i32) {
    %c0_i32 = arith.constant 0 : i32
    %c0_i32_0 = arith.constant 0 : i32
    return %arg0, %c0_i32 : i32, i32
  }
}

</mosaic_0001>

<llo_original>
// kernel: split.6
$region0: #{split.6}
  #allocation0 [shape = 'u32[2048]{0}', space=vmem, size = 0x2000, scoped, tag = 'scoped memory for split.6']
  #allocation1 [shape = 'u32[2048]{0}', space=vmem, size = 0x2000, scoped, tag = 'scoped memory for split.6']
  #allocation2 [shape = 'u32[2048]{0}', space=vmem, size = 0x2000, scoped, tag = 'scoped memory for split.6']
  #allocation3 [shape = 'u32[2048]{0}', space=vmem, size = 0x2000, scoped, tag = 'scoped memory for split.6']
  #allocation4 [shape = 'u32[2048]{0}', space=vmem, size = 0x2000, scoped, tag = 'scoped memory for split.6']
  #allocation7 [shape = 's32[1]{0}', space=sflag, size = 0x4, scoped, tag = 'scoped memory for split.6']
  %s0 = inlined_call_operand.vmem [shape: f32[1,24], index: 0, kind: input, shape index: {}]
  %s1 = inlined_call_operand.hbm [shape: f32[1,1], index: 1, kind: output, shape index: {}]
  $region1: #{split.6} parent=0
    #allocation5 [shape = 'u8[512]{0}', space=vmem, size = 0x400, scoped, tag = 'operand span for operand 1']
    #allocation6 [shape = 's32[1]{0}', space=sflag, size = 0x4, scoped, tag = 'scoped memory for split.6']
    %2 = vsyncpa [#allocation6], 0
    %v3 = vld [vmem:[%s0] sm:$0x1]
    %v4 = vlaneseq
    %v5 = vand.u32 %v4, 127
    %vm6 = vcmp.lt.s32.totalorder %v5, 23
    %v7 = vsel %vm6, 0, %v3
    %8 = vrot.lane.b32.xlu0 %v7, 105
    %v9 = vpop.permute.xlu0 %8
    %10 = vst [vmem:[#allocation5] sm:$0x1] %v9
    %s12 = ssub.s32 16, 16
    %13 = vsyncadd [#allocation6], %s12
    %s15 = sshll.u32 [#allocation5], 4
    %s16 = int_to_ptr.vmem [resolvable:$true] %s15
    %18 = dma.vmem_to_hbm [thread:$0]  %s16, 16, %s1, [#allocation6]
    %19 = dma.done [#allocation6], 16
    %20 = vsyncpa [#allocation6], 1

// kernel: split.4
$region0: #{split.4}
  #allocation0 [shape = 'u32[2048]{0}', space=vmem, size = 0x2000, scoped, tag = 'scoped memory for split.4']
  #allocation1 [shape = 'u32[2048]{0}', space=vmem, size = 0x2000, scoped, tag = 'scoped memory for split.4']
  #allocation2 [shape = 'u32[2048]{0}', space=vmem, size = 0x2000, scoped, tag = 'scoped memory for split.4']
  #allocation3 [shape = 'u32[2048]{0}', space=vmem, size = 0x2000, scoped, tag = 'scoped memory for split.4']
  #allocation4 [shape = 'u32[2048]{0}', space=vmem, size = 0x2000, scoped, tag = 'scoped memory for split.4']
  #allocation7 [shape = 's32[1]{0}', space=sflag, size = 0x4, scoped, tag = 'scoped memory for split.4']
  %s0 = inlined_call_operand.vmem [shape: f32[1,115], index: 0, kind: input, shape index: {}]
  %s1 = inlined_call_operand.hbm [shape: f32[1,6], index: 1, kind: output, shape index: {}]
  $region1: #{split.4} parent=0
    #allocation5 [shape = 'u8[512]{0}', space=vmem, size = 0x400, scoped, tag = 'operand span for operand 1']
    #allocation6 [shape = 's32[1]{0}', space=sflag, size = 0x4, scoped, tag = 'scoped memory for split.4']
    %2 = vsyncpa [#allocation6], 0
    %v3 = vld [vmem:[%s0] sm:$0x1]
    %v4 = vlaneseq
    %v5 = vand.u32 %v4, 127
    %vm6 = vcmp.lt.s32.totalorder %v5, 92
    %v7 = vsel %vm6, 0, %v3
    %8 = vrot.lane.b32.xlu0 %v7, 36
    %v9 = vpop.permute.xlu0 %8
    %10 = vst [vmem:[#allocation5] sm:$0x1] %v9
    %s12 = ssub.s32 16, 16
    %13 = vsyncadd [#allocation6], %s12
    %s15 = sshll.u32 [#allocation5], 4
    %s16 = int_to_ptr.vmem [resolvable:$true] %s15
    %18 = dma.vmem_to_hbm [thread:$0]  %s16, 16, %s1, [#allocation6]
    %19 = dma.done [#allocation6], 16
    %20 = vsyncpa [#allocation6], 1

// kernel: _device_run.1
$region0: #{_device_run.1}
  #allocation0 [shape = 'u32[]', space=smem, size = 0x4, offset = 0x4, fixed_abs, tag = 'smem constant byte address 0x4 - core index']
  #allocation1 [shape = 'u32[144,128]{1,0:T(1,128)}', space=vmem, size = 0x12000, scoped, tag = 'internal scratch']
  #allocation2 [shape = 'f32[8,128]{1,0:T(8,128)}', space=vmem, size = 0x1000, scoped, tag = 'scratch operand']
  %s0 = inlined_call_operand.vmem [shape: f32[8,128], index: 0, kind: input, shape index: {}]
  %s1 = inlined_call_operand.vmem [shape: f32[8,128], index: 1, kind: input, shape index: {}]
  %s2 = inlined_call_operand.hbm [shape: f32[544,128], index: 2, kind: input, shape index: {}]
  %s3 = inlined_call_operand.vmem [shape: f32[8,256], index: 3, kind: output, shape index: {}]
  %s4 = sld [smem:[#allocation0]]
  $region30: #{_device_run.1} parent=0
    _
  %s6 = ssub.s32 1, %s4
  %s7 = scalar_select 0, %s6, %s4
  $region1: #{_device_run.1} parent=0
    #allocation3 [shape = 'u8[278528]{0}', space=vmem, size = 0x44000, scoped, tag = 'input window, operand 2, single buffered']
    #allocation4 [shape = 's32[1]{0}', space=sflag, size = 0x4, scoped, tag = 'scoped memory for _device_run.1']
    %8 = vsyncpa [#allocation4], 0
    // Predicated region
    $region2: #{_device_run.1} parent=1 // pred_check
      _
    $region3: #{_device_run.1} parent=1 // pred_check_branch
      %10 = sbr.rel (0) target = $region5
    $region4: #{_device_run.1} parent=1 // pred_region
      _
    $region5: #{_device_run.1} parent=1 // pred_fallthru
      _
    // Predicated region
    $region6: #{_device_run.1} parent=1 // pred_check
      _
    $region7: #{_device_run.1} parent=1 // pred_check_branch
      %12 = sbr.rel (0) target = $region9
    $region8: #{_device_run.1} parent=1 // pred_region
      _
    $region9: #{_device_run.1} parent=1 // pred_fallthru
      _
    // Predicated region
    $region10: #{_device_run.1} parent=1 // pred_check
      _
    $region11: #{_device_run.1} parent=1 // pred_check_branch
      %14 = sbr.rel (0) target = $region13
    $region12: #{_device_run.1} parent=1 // pred_region
      %s16 = ssub.s32 8704, 8704
      %17 = vsyncadd [#allocation4], %s16
      %s18 = sshll.u32 [#allocation3], 4
      %s19 = int_to_ptr.vmem [resolvable:$true] %s18
      %24 = dma.hbm_to_vmem [thread:$0]  %s2, 8704, %s19, [#allocation4], 128, 128, 8
    $region13: #{_device_run.1} parent=1 // pred_fallthru
      _
    // Predicated region
    $region14: #{_device_run.1} parent=1 // pred_check
      _
    $region15: #{_device_run.1} parent=1 // pred_check_branch
      %26 = sbr.rel (0) target = $region17
    $region16: #{_device_run.1} parent=1 // pred_region
      %27 = dma.done [#allocation4], 8704
    $region17: #{_device_run.1} parent=1 // pred_fallthru
      _
    %v28 = vlaneseq
    %v29 = vand.u32 %v28, 127
    %v30 = vlaneseq
    %v31 = vshrl.u32 %v30, 7
    %p32 = scmp.eq.s32.totalorder 0, 0
    // Predicated region
    $region18: #{_device_run.1} parent=1 // pred_check
      %p33 = pneg %p32
    $region19: #{_device_run.1} parent=1 // pred_check_branch
      %35 = sbr.rel (%p33) target = $region21
    $region20: #{_device_run.1} parent=1 // pred_region
      %v36 = vld [vmem:[%s1] sm:$0xff]
      %37 = vst [vmem:[#allocation2] sm:$0xff] %v36
    $region21: #{_device_run.1} parent=1 // pred_fallthru
      _
    %v38 = vld [vmem:[%s0] sm:$0xff]
    %v39 = vld [vmem:[#allocation3] sm:$0xff]
    %v40 = vld [vmem:[#allocation3 + $0x8] sm:$0xff]
    %v41 = vld [vmem:[#allocation3 + $0x10] sm:$0xff]
    %v42 = vld [vmem:[#allocation3 + $0x18] sm:$0xff]
    %v43 = vld [vmem:[#allocation3 + $0x20] sm:$0xff]
    %v44 = vld [vmem:[#allocation3 + $0x28] sm:$0xff]
    %v45 = vld [vmem:[#allocation3 + $0x30] sm:$0xff]
    %v46 = vld [vmem:[#allocation3 + $0x38] sm:$0xff]
    %v47 = vld [vmem:[#allocation3 + $0x40] sm:$0xff]
    %v48 = vld [vmem:[#allocation3 + $0x48] sm:$0xff]
    %v49 = vld [vmem:[#allocation3 + $0x50] sm:$0xff]
    %v50 = vld [vmem:[#allocation3 + $0x58] sm:$0xff]
    %v51 = vld [vmem:[#allocation3 + $0x60] sm:$0xff]
    %v52 = vld [vmem:[#allocation3 + $0x68] sm:$0xff]
    %v53 = vld [vmem:[#allocation3 + $0x70] sm:$0xff]
    %v54 = vld [vmem:[#allocation3 + $0x78] sm:$0xff]
    %v55 = vld [vmem:[#allocation3 + $0x200] sm:$0x1]
    %v56 = vlaneseq
    %v57 = vshrl.u32 %v56, 7
    %v58 = vsub.s32 0, %v57
    %v59 = vrot.slane %v55, %v58
    %60 = vmatprep.subr.mxu0 0.0
    %61 = vmatpush1.msra.mxu0 %v54
    %62 = vmatprep.subr.mxu0 0.0
    %63 = vmatpush1.msra.mxu0 %v53
    %64 = vmatprep.subr.mxu0 0.0
    %65 = vmatpush1.msra.mxu0 %v52
    %66 = vmatprep.subr.mxu0 0.0
    %67 = vmatpush1.msra.mxu0 %v51
    %68 = vmatprep.subr.mxu0 0.0
    %69 = vmatpush1.msra.mxu0 %v50
    %70 = vmatprep.subr.mxu0 0.0
    %71 = vmatpush1.msra.mxu0 %v49
    %72 = vmatprep.subr.mxu0 0.0
    %73 = vmatpush1.msra.mxu0 %v48
    %74 = vmatprep.subr.mxu0 0.0
    %75 = vmatpush1.msra.mxu0 %v47
    %76 = vmatprep.subr.mxu0 0.0
    %77 = vmatpush1.msra.mxu0 %v46
    %78 = vmatprep.subr.mxu0 0.0
    %79 = vmatpush1.msra.mxu0 %v45
    %80 = vmatprep.subr.mxu0 0.0
    %81 = vmatpush1.msra.mxu0 %v44
    %82 = vmatprep.subr.mxu0 0.0
    %83 = vmatpush1.msra.mxu0 %v43
    %84 = vmatprep.subr.mxu0 0.0
    %85 = vmatpush1.msra.mxu0 %v42
    %86 = vmatprep.subr.mxu0 0.0
    %87 = vmatpush1.msra.mxu0 %v41
    %88 = vmatprep.subr.mxu0 0.0
    %89 = vmatpush1.msra.mxu0 %v40
    %90 = vmatprep.subr.mxu0 0.0
    %91 = vmatpush1.msra.mxu0 %v39
    %92 = vmatprep.subr.mxu0 0.0
    %93 = vmatpush2.msra.mxu0 0.0
    %94 = vmatprep.subr.mxu0 0.0
    %95 = vmatpush2.msra.mxu0 0.0
    %96 = vmatprep.subr.mxu0 0.0
    %97 = vmatpush2.msra.mxu0 0.0
    %98 = vmatprep.subr.mxu0 0.0
    %99 = vmatpush2.msra.mxu0 0.0
    %100 = vmatprep.subr.mxu0 0.0
    %101 = vmatpush2.msra.mxu0 0.0
    %102 = vmatprep.subr.mxu0 0.0
    %103 = vmatpush2.msra.mxu0 0.0
    %104 = vmatprep.subr.mxu0 0.0
    %105 = vmatpush2.msra.mxu0 0.0
    %106 = vmatprep.subr.mxu0 0.0
    %107 = vmatpush2.msra.mxu0 0.0
    %108 = vmatprep.subr.mxu0 0.0
    %109 = vmatpush2.msra.mxu0 0.0
    %110 = vmatprep.subr.mxu0 0.0
    %111 = vmatpush2.msra.mxu0 0.0
    %112 = vmatprep.subr.mxu0 0.0
    %113 = vmatpush2.msra.mxu0 0.0
    %114 = vmatprep.subr.mxu0 0.0
    %115 = vmatpush2.msra.mxu0 0.0
    %116 = vmatprep.subr.mxu0 0.0
    %117 = vmatpush2.msra.mxu0 0.0
    %118 = vmatprep.subr.mxu0 0.0
    %119 = vmatpush2.msra.mxu0 0.0
    %120 = vmatprep.subr.mxu0 0.0
    %121 = vmatpush2.msra.mxu0 0.0
    %122 = vmatprep.subr.mxu0 0.0
    %123 = vmatpush2.msra.mxu0 0.0
    %124 = vmatprep.mubr.f32.mxu0 0.0
    %125 = vmatmul.mubr.f32.gmra.mxu0 %v38
    %v126 = vpop.f32.mrf.mxu0
    %v127 = vadd.f32 %v59, %v126
    %v128 = vpop.f32.mrf.mxu0
    %129 = vdwg.mxu0
    %v130 = vtanh.pop %v127
    %v131 = vld [vmem:[#allocation3 + $0x80] sm:$0xff]
    %v132 = vld [vmem:[#allocation3 + $0x88] sm:$0xff]
    %v133 = vld [vmem:[#allocation3 + $0x90] sm:$0xff]
    %v134 = vld [vmem:[#allocation3 + $0x98] sm:$0xff]
    %v135 = vld [vmem:[#allocation3 + $0xa0] sm:$0xff]
    %v136 = vld [vmem:[#allocation3 + $0xa8] sm:$0xff]
    %v137 = vld [vmem:[#allocation3 + $0xb0] sm:$0xff]
    %v138 = vld [vmem:[#allocation3 + $0xb8] sm:$0xff]
    %v139 = vld [vmem:[#allocation3 + $0xc0] sm:$0xff]
    %v140 = vld [vmem:[#allocation3 + $0xc8] sm:$0xff]
    %v141 = vld [vmem:[#allocation3 + $0xd0] sm:$0xff]
    %v142 = vld [vmem:[#allocation3 + $0xd8] sm:$0xff]
    %v143 = vld [vmem:[#allocation3 + $0xe0] sm:$0xff]
    %v144 = vld [vmem:[#allocation3 + $0xe8] sm:$0xff]
    %v145 = vld [vmem:[#allocation3 + $0xf0] sm:$0xff]
    %v146 = vld [vmem:[#allocation3 + $0xf8] sm:$0xff]
    %v147 = vld [vmem:[#allocation3 + $0x208] sm:$0x1]
    %v148 = vlaneseq
    %v149 = vshrl.u32 %v148, 7
    %v150 = vsub.s32 0, %v149
    %v151 = vrot.slane %v147, %v150
    %152 = vmatprep.subr.mxu0 0.0
    %153 = vmatpush1.msra.mxu0 %v146
    %154 = vmatprep.subr.mxu0 0.0
    %155 = vmatpush1.msra.mxu0 %v145
    %156 = vmatprep.subr.mxu0 0.0
    %157 = vmatpush1.msra.mxu0 %v144
    %158 = vmatprep.subr.mxu0 0.0
    %159 = vmatpush1.msra.mxu0 %v143
    %160 = vmatprep.subr.mxu0 0.0
    %161 = vmatpush1.msra.mxu0 %v142
    %162 = vmatprep.subr.mxu0 0.0
    %163 = vmatpush1.msra.mxu0 %v141
    %164 = vmatprep.subr.mxu0 0.0
    %165 = vmatpush1.msra.mxu0 %v140
    %166 = vmatprep.subr.mxu0 0.0
    %167 = vmatpush1.msra.mxu0 %v139
    %168 = vmatprep.subr.mxu0 0.0
    %169 = vmatpush1.msra.mxu0 %v138
    %170 = vmatprep.subr.mxu0 0.0
    %171 = vmatpush1.msra.mxu0 %v137
    %172 = vmatprep.subr.mxu0 0.0
    %173 = vmatpush1.msra.mxu0 %v136
    %174 = vmatprep.subr.mxu0 0.0
    %175 = vmatpush1.msra.mxu0 %v135
    %176 = vmatprep.subr.mxu0 0.0
    %177 = vmatpush1.msra.mxu0 %v134
    %178 = vmatprep.subr.mxu0 0.0
    %179 = vmatpush1.msra.mxu0 %v133
    %180 = vmatprep.subr.mxu0 0.0
    %181 = vmatpush1.msra.mxu0 %v132
    %182 = vmatprep.subr.mxu0 0.0
    %183 = vmatpush1.msra.mxu0 %v131
    %184 = vmatprep.subr.mxu0 0.0
    %185 = vmatpush2.msra.mxu0 0.0
    %186 = vmatprep.subr.mxu0 0.0
    %187 = vmatpush2.msra.mxu0 0.0
    %188 = vmatprep.subr.mxu0 0.0
    %189 = vmatpush2.msra.mxu0 0.0
    %190 = vmatprep.subr.mxu0 0.0
    %191 = vmatpush2.msra.mxu0 0.0
    %192 = vmatprep.subr.mxu0 0.0
    %193 = vmatpush2.msra.mxu0 0.0
    %194 = vmatprep.subr.mxu0 0.0
    %195 = vmatpush2.msra.mxu0 0.0
    %196 = vmatprep.subr.mxu0 0.0
    %197 = vmatpush2.msra.mxu0 0.0
    %198 = vmatprep.subr.mxu0 0.0
    %199 = vmatpush2.msra.mxu0 0.0
    %200 = vmatprep.subr.mxu0 0.0
    %201 = vmatpush2.msra.mxu0 0.0
    %202 = vmatprep.subr.mxu0 0.0
    %203 = vmatpush2.msra.mxu0 0.0
    %204 = vmatprep.subr.mxu0 0.0
    %205 = vmatpush2.msra.mxu0 0.0
    %206 = vmatprep.subr.mxu0 0.0
    %207 = vmatpush2.msra.mxu0 0.0
    %208 = vmatprep.subr.mxu0 0.0
    %209 = vmatpush2.msra.mxu0 0.0
    %210 = vmatprep.subr.mxu0 0.0
    %211 = vmatpush2.msra.mxu0 0.0
    %212 = vmatprep.subr.mxu0 0.0
    %213 = vmatpush2.msra.mxu0 0.0
    %214 = vmatprep.subr.mxu0 0.0
    %215 = vmatpush2.msra.mxu0 0.0
    %216 = vmatprep.mubr.f32.mxu0 0.0
    %217 = vmatmul.mubr.f32.gmra.mxu0 %v130
    %v218 = vpop.f32.mrf.mxu0
    %v219 = vadd.f32 %v151, %v218
    %v220 = vpop.f32.mrf.mxu0
    %221 = vdwg.mxu0
    %v222 = vtanh.pop %v219
    %vm223 = vcmp.lt.s32.totalorder %v29, 6
    %v224 = vsel %vm223, %v222, 0.0
    %vm225 = vcmp.lt.s32.totalorder %v29, 23
    %226 = vrot.lane.b32.xlu0 %v38, 6
    %v227 = vpop.permute.xlu0 %226
    %v228 = vadd.f32 %v224, %v227
    %v229 = vsel %vm225, %v228, 0.0
    %v230 = vld [vmem:[#allocation2] sm:$0xff]
    %231 = vrot.lane.b32.xlu0 %v229, 92
    %v232 = vpop.permute.xlu0 %231
    %v233 = vrot.slane %v229, 7
    %v234 = vrot.slane %v230, 7
    %vm235 = vcmp.ge.s32.totalorder %v31, 1
    %v236 = vsel %vm235, %v233, %v234
    %237 = vrot.lane.b32.xlu0 %v236, 69
    %v238 = vpop.permute.xlu0 %237
    %v239 = vadd.f32 %v232, %v238
    %v240 = vrot.slane %v229, 6
    %v241 = vrot.slane %v230, 6
    %vm242 = vcmp.ge.s32.totalorder %v31, 2
    %v243 = vsel %vm242, %v240, %v241
    %244 = vrot.lane.b32.xlu0 %v243, 46
    %v245 = vpop.permute.xlu0 %244
    %v246 = vadd.f32 %v239, %v245
    %v247 = vrot.slane %v229, 5
    %v248 = vrot.slane %v230, 5
    %vm249 = vcmp.ge.s32.totalorder %v31, 3
    %v250 = vsel %vm249, %v247, %v248
    %251 = vrot.lane.b32.xlu0 %v250, 23
    %v252 = vpop.permute.xlu0 %251
    %v253 = vadd.f32 %v246, %v252
    %v254 = vrot.slane %v229, 4
    %v255 = vrot.slane %v230, 4
    %vm256 = vcmp.ge.s32.totalorder %v31, 4
    %v257 = vsel %vm256, %v254, %v255
    %v258 = vadd.f32 %v253, %v257
    %259 = vst [vmem:[#allocation2] sm:$0xff] %v229
    %v260 = vld [vmem:[#allocation3 + $0x100] sm:$0xff]
    %v261 = vld [vmem:[#allocation3 + $0x108] sm:$0xff]
    %v262 = vld [vmem:[#allocation3 + $0x110] sm:$0xff]
    %v263 = vld [vmem:[#allocation3 + $0x118] sm:$0xff]
    %v264 = vld [vmem:[#allocation3 + $0x120] sm:$0xff]
    %v265 = vld [vmem:[#allocation3 + $0x128] sm:$0xff]
    %v266 = vld [vmem:[#allocation3 + $0x130] sm:$0xff]
    %v267 = vld [vmem:[#allocation3 + $0x138] sm:$0xff]
    %v268 = vld [vmem:[#allocation3 + $0x140] sm:$0xff]
    %v269 = vld [vmem:[#allocation3 + $0x148] sm:$0xff]
    %v270 = vld [vmem:[#allocation3 + $0x150] sm:$0xff]
    %v271 = vld [vmem:[#allocation3 + $0x158] sm:$0xff]
    %v272 = vld [vmem:[#allocation3 + $0x160] sm:$0xff]
    %v273 = vld [vmem:[#allocation3 + $0x168] sm:$0xff]
    %v274 = vld [vmem:[#allocation3 + $0x170] sm:$0xff]
    %v275 = vld [vmem:[#allocation3 + $0x178] sm:$0xff]
    %v276 = vld [vmem:[#allocation3 + $0x210] sm:$0x1]
    %v277 = vlaneseq
    %v278 = vshrl.u32 %v277, 7
    %v279 = vsub.s32 0, %v278
    %v280 = vrot.slane %v276, %v279
    %281 = vmatprep.subr.mxu0 0.0
    %282 = vmatpush1.msra.mxu0 %v275
    %283 = vmatprep.subr.mxu0 0.0
    %284 = vmatpush1.msra.mxu0 %v274
    %285 = vmatprep.subr.mxu0 0.0
    %286 = vmatpush1.msra.mxu0 %v273
    %287 = vmatprep.subr.mxu0 0.0
    %288 = vmatpush1.msra.mxu0 %v272
    %289 = vmatprep.subr.mxu0 0.0
    %290 = vmatpush1.msra.mxu0 %v271
    %291 = vmatprep.subr.mxu0 0.0
    %292 = vmatpush1.msra.mxu0 %v270
    %293 = vmatprep.subr.mxu0 0.0
    %294 = vmatpush1.msra.mxu0 %v269
    %295 = vmatprep.subr.mxu0 0.0
    %296 = vmatpush1.msra.mxu0 %v268
    %297 = vmatprep.subr.mxu0 0.0
    %298 = vmatpush1.msra.mxu0 %v267
    %299 = vmatprep.subr.mxu0 0.0
    %300 = vmatpush1.msra.mxu0 %v266
    %301 = vmatprep.subr.mxu0 0.0
    %302 = vmatpush1.msra.mxu0 %v265
    %303 = vmatprep.subr.mxu0 0.0
    %304 = vmatpush1.msra.mxu0 %v264
    %305 = vmatprep.subr.mxu0 0.0
    %306 = vmatpush1.msra.mxu0 %v263
    %307 = vmatprep.subr.mxu0 0.0
    %308 = vmatpush1.msra.mxu0 %v262
    %309 = vmatprep.subr.mxu0 0.0
    %310 = vmatpush1.msra.mxu0 %v261
    %311 = vmatprep.subr.mxu0 0.0
    %312 = vmatpush1.msra.mxu0 %v260
    %313 = vmatprep.subr.mxu0 0.0
    %314 = vmatpush2.msra.mxu0 0.0
    %315 = vmatprep.subr.mxu0 0.0
    %316 = vmatpush2.msra.mxu0 0.0
    %317 = vmatprep.subr.mxu0 0.0
    %318 = vmatpush2.msra.mxu0 0.0
    %319 = vmatprep.subr.mxu0 0.0
    %320 = vmatpush2.msra.mxu0 0.0
    %321 = vmatprep.subr.mxu0 0.0
    %322 = vmatpush2.msra.mxu0 0.0
    %323 = vmatprep.subr.mxu0 0.0
    %324 = vmatpush2.msra.mxu0 0.0
    %325 = vmatprep.subr.mxu0 0.0
    %326 = vmatpush2.msra.mxu0 0.0
    %327 = vmatprep.subr.mxu0 0.0
    %328 = vmatpush2.msra.mxu0 0.0
    %329 = vmatprep.subr.mxu0 0.0
    %330 = vmatpush2.msra.mxu0 0.0
    %331 = vmatprep.subr.mxu0 0.0
    %332 = vmatpush2.msra.mxu0 0.0
    %333 = vmatprep.subr.mxu0 0.0
    %334 = vmatpush2.msra.mxu0 0.0
    %335 = vmatprep.subr.mxu0 0.0
    %336 = vmatpush2.msra.mxu0 0.0
    %337 = vmatprep.subr.mxu0 0.0
    %338 = vmatpush2.msra.mxu0 0.0
    %339 = vmatprep.subr.mxu0 0.0
    %340 = vmatpush2.msra.mxu0 0.0
    %341 = vmatprep.subr.mxu0 0.0
    %342 = vmatpush2.msra.mxu0 0.0
    %343 = vmatprep.subr.mxu0 0.0
    %344 = vmatpush2.msra.mxu0 0.0
    %345 = vmatprep.mubr.f32.mxu0 0.0
    %346 = vmatmul.mubr.f32.gmra.mxu0 %v258
    %v347 = vpop.f32.mrf.mxu0
    %v348 = vadd.f32 %v280, %v347
    %v349 = vpop.f32.mrf.mxu0
    %350 = vdwg.mxu0
    %v351 = vtanh.pop %v348
    %v352 = vld [vmem:[#allocation3 + $0x180] sm:$0xff]
    %v353 = vld [vmem:[#allocation3 + $0x188] sm:$0xff]
    %v354 = vld [vmem:[#allocation3 + $0x190] sm:$0xff]
    %v355 = vld [vmem:[#allocation3 + $0x198] sm:$0xff]
    %v356 = vld [vmem:[#allocation3 + $0x1a0] sm:$0xff]
    %v357 = vld [vmem:[#allocation3 + $0x1a8] sm:$0xff]
    %v358 = vld [vmem:[#allocation3 + $0x1b0] sm:$0xff]
    %v359 = vld [vmem:[#allocation3 + $0x1b8] sm:$0xff]
    %v360 = vld [vmem:[#allocation3 + $0x1c0] sm:$0xff]
    %v361 = vld [vmem:[#allocation3 + $0x1c8] sm:$0xff]
    %v362 = vld [vmem:[#allocation3 + $0x1d0] sm:$0xff]
    %v363 = vld [vmem:[#allocation3 + $0x1d8] sm:$0xff]
    %v364 = vld [vmem:[#allocation3 + $0x1e0] sm:$0xff]
    %v365 = vld [vmem:[#allocation3 + $0x1e8] sm:$0xff]
    %v366 = vld [vmem:[#allocation3 + $0x1f0] sm:$0xff]
    %v367 = vld [vmem:[#allocation3 + $0x1f8] sm:$0xff]
    %v368 = vld [vmem:[#allocation3 + $0x218] sm:$0x1]
    %v369 = vlaneseq
    %v370 = vshrl.u32 %v369, 7
    %v371 = vsub.s32 0, %v370
    %v372 = vrot.slane %v368, %v371
    %373 = vmatprep.subr.mxu0 0.0
    %374 = vmatpush1.msra.mxu0 %v367
    %375 = vmatprep.subr.mxu0 0.0
    %376 = vmatpush1.msra.mxu0 %v366
    %377 = vmatprep.subr.mxu0 0.0
    %378 = vmatpush1.msra.mxu0 %v365
    %379 = vmatprep.subr.mxu0 0.0
    %380 = vmatpush1.msra.mxu0 %v364
    %381 = vmatprep.subr.mxu0 0.0
    %382 = vmatpush1.msra.mxu0 %v363
    %383 = vmatprep.subr.mxu0 0.0
    %384 = vmatpush1.msra.mxu0 %v362
    %385 = vmatprep.subr.mxu0 0.0
    %386 = vmatpush1.msra.mxu0 %v361
    %387 = vmatprep.subr.mxu0 0.0
    %388 = vmatpush1.msra.mxu0 %v360
    %389 = vmatprep.subr.mxu0 0.0
    %390 = vmatpush1.msra.mxu0 %v359
    %391 = vmatprep.subr.mxu0 0.0
    %392 = vmatpush1.msra.mxu0 %v358
    %393 = vmatprep.subr.mxu0 0.0
    %394 = vmatpush1.msra.mxu0 %v357
    %395 = vmatprep.subr.mxu0 0.0
    %396 = vmatpush1.msra.mxu0 %v356
    %397 = vmatprep.subr.mxu0 0.0
    %398 = vmatpush1.msra.mxu0 %v355
    %399 = vmatprep.subr.mxu0 0.0
    %400 = vmatpush1.msra.mxu0 %v354
    %401 = vmatprep.subr.mxu0 0.0
    %402 = vmatpush1.msra.mxu0 %v353
    %403 = vmatprep.subr.mxu0 0.0
    %404 = vmatpush1.msra.mxu0 %v352
    %405 = vmatprep.subr.mxu0 0.0
    %406 = vmatpush2.msra.mxu0 0.0
    %407 = vmatprep.subr.mxu0 0.0
    %408 = vmatpush2.msra.mxu0 0.0
    %409 = vmatprep.subr.mxu0 0.0
    %410 = vmatpush2.msra.mxu0 0.0
    %411 = vmatprep.subr.mxu0 0.0
    %412 = vmatpush2.msra.mxu0 0.0
    %413 = vmatprep.subr.mxu0 0.0
    %414 = vmatpush2.msra.mxu0 0.0
    %415 = vmatprep.subr.mxu0 0.0
    %416 = vmatpush2.msra.mxu0 0.0
    %417 = vmatprep.subr.mxu0 0.0
    %418 = vmatpush2.msra.mxu0 0.0
    %419 = vmatprep.subr.mxu0 0.0
    %420 = vmatpush2.msra.mxu0 0.0
    %421 = vmatprep.subr.mxu0 0.0
    %422 = vmatpush2.msra.mxu0 0.0
    %423 = vmatprep.subr.mxu0 0.0
    %424 = vmatpush2.msra.mxu0 0.0
    %425 = vmatprep.subr.mxu0 0.0
    %426 = vmatpush2.msra.mxu0 0.0
    %427 = vmatprep.subr.mxu0 0.0
    %428 = vmatpush2.msra.mxu0 0.0
    %429 = vmatprep.subr.mxu0 0.0
    %430 = vmatpush2.msra.mxu0 0.0
    %431 = vmatprep.subr.mxu0 0.0
    %432 = vmatpush2.msra.mxu0 0.0
    %433 = vmatprep.subr.mxu0 0.0
    %434 = vmatpush2.msra.mxu0 0.0
    %435 = vmatprep.subr.mxu0 0.0
    %436 = vmatpush2.msra.mxu0 0.0
    %437 = vmatprep.mubr.f32.mxu0 0.0
    %438 = vmatmul.mubr.f32.gmra.mxu0 %v351
    %v439 = vpop.f32.mrf.mxu0
    %v440 = vadd.f32 %v372, %v439
    %v441 = vpop.f32.mrf.mxu0
    %442 = vdwg.mxu0
    %vm443 = vcmp.lt.s32.totalorder %v29, 115
    %v444 = vsub.f32 %v440, %v258
    %v445 = vsel %vm443, %v444, 0.0
    %v446 = vmul.f32 %v445, %v445
    %447 = vadd.xlane.f32.xlu0 %v446
    %v448 = vpop.xlane.xlu0 %447
    %v449 = vmul.f32 %v448, 0.008695652
    %vm450 = vcmp.eq.s32.totalorder %v29, 127
    %v451 = vsel %vm450, %v449, %v224
    %452 = vst [vmem:[%s3] sm:$0xff] %v451
    %453 = vst [vmem:[%s3 + $0x8] sm:$0xff] %v258
    // Predicated region
    $region22: #{_device_run.1} parent=1 // pred_check
      _
    $region23: #{_device_run.1} parent=1 // pred_check_branch
      %455 = sbr.rel (0) target = $region25
    $region24: #{_device_run.1} parent=1 // pred_region
      _
    $region25: #{_device_run.1} parent=1 // pred_fallthru
      _
    // Predicated region
    $region26: #{_device_run.1} parent=1 // pred_check
      _
    $region27: #{_device_run.1} parent=1 // pred_check_branch
      %457 = sbr.rel (0) target = $region29
    $region28: #{_device_run.1} parent=1 // pred_region
      _
    $region29: #{_device_run.1} parent=1 // pred_fallthru
      _
    %458 = vsyncpa [#allocation4], 1

</llo_original>
